<compile_context>
chip_gen: v6e
topology: v6e:2x2x1
jax: 0.10.0
libtpu: 0.0.40
codegen_flags: <defaults>
</compile_context>

<pallas_src>
import jax
import jax.numpy as jnp
from jax.experimental import pallas as pl
from jax.experimental.pallas import tpu as pltpu


def _round_up(x, m):
    return ((x + m - 1) // m) * m


def _vmem_capacity_bytes():
    """Per-TensorCore VMEM capacity; conservative fallback if unqueryable."""
    try:
        info = pltpu.get_tpu_info()
        cap = getattr(info, "vmem_capacity_bytes", None)
        if cap:
            return int(cap)
    except Exception:
        pass
    return 64 * 1024 * 1024  # v7x-sized fallback (safe on every generation)


def _make_sstv_kernel(W, HW, yz_hw):
    # result[j] = x[(j + k) % HW]  is  pltpu.roll(x, HW - k, axis=-1).
    shift_y = (HW - W) % HW   # fused-index "+W"  -> next row    (h+1, w)
    shift_x = (HW - 1) % HW   # fused-index "+1"  -> next column (h, w+1)

    def _next(x, amt):
        if amt == 0:
            return x
        # Lane-axis rotation runs on the XLU slot and avoids materializing
        # misaligned lane slices.
        return pltpu.roll(x, amt, axis=2)

    def kernel(a_ref, yz_ref, xz_ref):
        a = a_ref[...]                                  # (TB, D, HW)
        gz = jnp.abs(a[:, :-1, :] - a[:, 1:, :])        # (TB, D-1, HW)
        yz_full = jnp.abs(gz - _next(gz, shift_y))      # garbage in last fused row
        xz_full = jnp.abs(gz - _next(gz, shift_x))      # garbage in last column
        # yz: drop the garbage last row in-kernel (contiguous prefix of the
        # fused row-major axis) -> no wrapper slice pass needed.
        yz_ref[...] = yz_full[:, :, :yz_hw]
        xz_ref[...] = xz_full

    return kernel


def sstv_loss(a, *, vmem_budget_bytes=None):
    """Pallas implementation of SSTV_Loss.forward.

    a: (N, C, D, H, W) float array.
    returns (gradient_a_yz, gradient_a_xz) with shapes
            (N, C, D-1, H-1, W) and (N, C, D-1, H, W-1).
    """
    N, C, D, H, W = a.shape

    if D < 2:
        # Zero-extent depth axis: nothing to compute.
        yz = jnp.zeros((N, C, 0, max(H - 1, 0), W), a.dtype)
        xz = jnp.zeros((N, C, 0, H, max(W - 1, 0)), a.dtype)
        return yz, xz

    B = N * C
    HW = H * W
    compact_yz = H >= 2
    yz_hw = (H - 1) * W if compact_yz else HW   # compacted yz lane extent
    a_flat = a.reshape(B, D, HW)                # lane-dense layout: last dim = H*W

    # ---- generation-aware VMEM budget & block sizing -----------------------
    itemsize = jnp.dtype(a.dtype).itemsize
    sublane = max(8, 32 // itemsize)            # 8 (f32), 16 (bf16), 32 (int8)
    d_pad = _round_up(D, sublane)
    d1_pad = _round_up(D - 1, sublane)
    hw_pad = _round_up(HW, 128)
    yz_pad = _round_up(yz_hw, 128)

    vmem_limit = min(_vmem_capacity_bytes() // 2, 64 * 1024 * 1024)
    if vmem_budget_bytes is None:
        vmem_budget_bytes = int(vmem_limit * 0.8)   # headroom for compiler scratch

    # Double-buffered pipeline buffers + in-kernel temporaries per batch item,
    # with sublane/lane padding included (D pads to 8/16, HW to 128 multiples).
    per_item = itemsize * (
        2 * d_pad * hw_pad          # input block (double-buffered)
        + 2 * d1_pad * yz_pad       # yz output block (double-buffered)
        + 2 * d1_pad * hw_pad       # xz output block (double-buffered)
        + d_pad * hw_pad            # loaded input value
        + 3 * d1_pad * hw_pad       # gz, rolled copy, diff temporaries
    )

    # TODO(synk): for volumes where even a single (1, D, H*W) slab blows the
    # VMEM budget, add a depth-blocked variant with a +1 halo slab.
    TB = max(1, min(B, vmem_budget_bytes // per_item))
    if B >= 2:
        # Keep >= 2 grid steps: pipeline overlap everywhere, and both
        # TensorCores busy on v7x (single grid axis is marked "parallel").
        TB = min(TB, pl.cdiv(B, 2))
    grid = (pl.cdiv(B, TB),)

    kernel = _make_sstv_kernel(W, HW, yz_hw)

    yz_flat, xz_flat = pl.pallas_call(
        kernel,
        out_shape=(
            jax.ShapeDtypeStruct((B, D - 1, yz_hw), a.dtype),
            jax.ShapeDtypeStruct((B, D - 1, HW), a.dtype),
        ),
        grid_spec=pltpu.PrefetchScalarGridSpec(
            num_scalar_prefetch=0,
            grid=grid,
            in_specs=[
                # One (TB, D, H*W) block per step: each slab read exactly once.
                pl.BlockSpec((TB, D, HW), lambda b: (b, 0, 0)),
            ],
            out_specs=[
                # yz already compacted (block last dims == full array extents).
                pl.BlockSpec((TB, D - 1, yz_hw), lambda b: (b, 0, 0)),
                # xz full-HW (garbage column sliced off in the wrapper).
                # TODO(synk): for W >= 128, store a compacted (TB, D-1, H, W-1)
                # block in-kernel too and drop the wrapper slice pass.
                pl.BlockSpec((TB, D - 1, HW), lambda b: (b, 0, 0)),
            ],
        ),
        compiler_params=pltpu.CompilerParams(
            dimension_semantics=("parallel",),
            vmem_limit_bytes=int(vmem_limit),
        ),
    )(a_flat)

    if compact_yz:
        gradient_a_yz = yz_flat.reshape(N, C, D - 1, H - 1, W)   # free reshape only
    else:  # H == 1: yz is empty along the H-1 axis.
        gradient_a_yz = yz_flat.reshape(B, D - 1, H, W)[:, :, : H - 1, :].reshape(
            N, C, D - 1, H - 1, W)
    gradient_a_xz = xz_flat.reshape(B, D - 1, H, W)[:, :, :, : W - 1].reshape(
        N, C, D - 1, H, W - 1)
    return gradient_a_yz, gradient_a_xz


def _sstv_ref(a):
    gz = jnp.abs(a[:, :, :-1, :, :] - a[:, :, 1:, :, :])
    gyz = jnp.abs(gz[:, :, :, :-1, :] - gz[:, :, :, 1:, :])
    gxz = jnp.abs(gz[:, :, :, :, :-1] - gz[:, :, :, :, 1:])
    return gyz, gxz


if __name__ == "__main__":
    # Small deterministic input consistent with a 5-D (N, C, D, H, W) volume.
    N, C, D, H, W = 2, 4, 3, 16, 16
    key = jax.random.PRNGKey(0)
    a = jax.random.normal(key, (N, C, D, H, W), dtype=jnp.float32)

    yz, xz = sstv_loss(a)
    jax.block_until_ready((yz, xz))

    yz_ref, xz_ref = _sstv_ref(a)
    assert yz.shape == (N, C, D - 1, H - 1, W)
    assert xz.shape == (N, C, D - 1, H, W - 1)
    assert jnp.allclose(yz, yz_ref, atol=1e-6)
    assert jnp.allclose(xz, xz_ref, atol=1e-6)

    print("KERNEL_OK")
</pallas_src>

<mosaic_0001>
module attributes {stable_mosaic.version = 11 : i64} {
  func.func @kernel(%arg0: i32, %arg1: memref<4x3x256xf32, #tpu.memory_space<vmem>>, %arg2: memref<4x2x240xf32, #tpu.memory_space<vmem>>, %arg3: memref<4x2x256xf32, #tpu.memory_space<vmem>>) attributes {dimension_semantics = [#tpu.dimension_semantics<parallel>], iteration_bounds = array<i64: 2>, scalar_prefetch = 0 : i64, scratch_operands = 0 : i64, tpu.core_type = #tpu.core_type<tc>, window_params = [{transform_indices = @transform_0, window_bounds = array<i64: 4, 3, 256>}, {transform_indices = @transform_1, window_bounds = array<i64: 4, 2, 240>}, {transform_indices = @transform_2, window_bounds = array<i64: 4, 2, 256>}]} {
    %c0 = arith.constant 0 : index
    %c0_0 = arith.constant 0 : index
    %c0_1 = arith.constant 0 : index
    %0 = vector.load %arg1[%c0, %c0_0, %c0_1] : memref<4x3x256xf32, #tpu.memory_space<vmem>>, vector<4x3x256xf32>
    %1 = vector.extract_strided_slice %0 {offsets = [0, 0, 0], sizes = [4, 2, 256], strides = [1, 1, 1]} : vector<4x3x256xf32> to vector<4x2x256xf32>
    %2 = vector.extract_strided_slice %0 {offsets = [0, 1, 0], sizes = [4, 2, 256], strides = [1, 1, 1]} : vector<4x3x256xf32> to vector<4x2x256xf32>
    %3 = arith.subf %1, %2 : vector<4x2x256xf32>
    %4 = math.absf %3 : vector<4x2x256xf32>
    %c240_i32 = arith.constant 240 : i32
    %5 = tpu.dynamic_rotate %4 by %c240_i32 dim 2 : vector<4x2x256xf32>, i32 -> vector<4x2x256xf32>
    %6 = arith.subf %4, %5 : vector<4x2x256xf32>
    %7 = math.absf %6 : vector<4x2x256xf32>
    %c255_i32 = arith.constant 255 : i32
    %8 = tpu.dynamic_rotate %4 by %c255_i32 dim 2 : vector<4x2x256xf32>, i32 -> vector<4x2x256xf32>
    %9 = arith.subf %4, %8 : vector<4x2x256xf32>
    %10 = math.absf %9 : vector<4x2x256xf32>
    %11 = vector.extract_strided_slice %7 {offsets = [0, 0, 0], sizes = [4, 2, 240], strides = [1, 1, 1]} : vector<4x2x256xf32> to vector<4x2x240xf32>
    %c0_2 = arith.constant 0 : index
    %c0_3 = arith.constant 0 : index
    %c0_4 = arith.constant 0 : index
    %12 = vector.load %arg2[%c0_2, %c0_3, %c0_4] : memref<4x2x240xf32, #tpu.memory_space<vmem>>, vector<4x2x240xf32>
    tpu.vector_store %arg2[%c0_2, %c0_3, %c0_4], %11 {strides = array<i32>} : memref<4x2x240xf32, #tpu.memory_space<vmem>>, vector<4x2x240xf32>,
    %c0_5 = arith.constant 0 : index
    %c0_6 = arith.constant 0 : index
    %c0_7 = arith.constant 0 : index
    %13 = vector.load %arg3[%c0_5, %c0_6, %c0_7] : memref<4x2x256xf32, #tpu.memory_space<vmem>>, vector<4x2x256xf32>
    tpu.vector_store %arg3[%c0_5, %c0_6, %c0_7], %10 {strides = array<i32>} : memref<4x2x256xf32, #tpu.memory_space<vmem>>, vector<4x2x256xf32>,
    return
  }
  func.func @transform_0(%arg0: i32) -> (i32, i32, i32) {
    %c0_i32 = arith.constant 0 : i32
    %c0_i32_0 = arith.constant 0 : i32
    %c0_i32_1 = arith.constant 0 : i32
    return %arg0, %c0_i32, %c0_i32_0 : i32, i32, i32
  }
  func.func @transform_1(%arg0: i32) -> (i32, i32, i32) {
    %c0_i32 = arith.constant 0 : i32
    %c0_i32_0 = arith.constant 0 : i32
    %c0_i32_1 = arith.constant 0 : i32
    return %arg0, %c0_i32, %c0_i32_0 : i32, i32, i32
  }
  func.func @transform_2(%arg0: i32) -> (i32, i32, i32) {
    %c0_i32 = arith.constant 0 : i32
    %c0_i32_0 = arith.constant 0 : i32
    %c0_i32_1 = arith.constant 0 : i32
    return %arg0, %c0_i32, %c0_i32_0 : i32, i32, i32
  }
}

</mosaic_0001>

<llo_original>
// kernel: tpu_custom_call.1
$region0: #{tpu_custom_call.1}
  #allocation0 [shape = 'u32[]', space=smem, size = 0x4, offset = 0x4, fixed_abs, tag = 'smem constant byte address 0x4 - core index']
  #allocation1 [shape = 'u32[144,128]{1,0:T(1,128)}', space=vmem, size = 0x12000, scoped, tag = 'internal scratch']
  %s0 = inlined_call_operand.vmem [shape: f32[8,3,256], index: 0, kind: input, shape index: {}]
  %s1 = inlined_call_operand.hbm [shape: f32[8,2,240], index: 1, kind: output, shape index: {0}]
  %s2 = inlined_call_operand.hbm [shape: f32[8,2,256], index: 2, kind: output, shape index: {1}]
  %3 = xla_tuple %s1, %s2
  %s4 = sld [smem:[#allocation0]]
  $region45: #{tpu_custom_call.1} parent=0
    _
  %s6 = ssub.s32 1, %s4
  %s7 = scalar_select 0, %s6, %s4
  $region1: #{tpu_custom_call.1} parent=0
    #allocation2 [shape = 'u8[16384]{0}', space=vmem, size = 0x4000, scoped, tag = 'output window, operand 0']
    #allocation3 [shape = 's32[2]{0}', space=sflag, size = 0x8, scoped, tag = 'scoped memory for tpu_custom_call.1']
    #allocation4 [shape = 'u8[16384]{0}', space=vmem, size = 0x4000, scoped, tag = 'output window, operand 1']
    #allocation5 [shape = 's32[2]{0}', space=sflag, size = 0x8, scoped, tag = 'scoped memory for tpu_custom_call.1']
    %8 = vsyncpa [#allocation3], 0
    %s9 = scalar_lea.sflag [#allocation3], 1
    %10 = vsyncpa %s9, 0
    %11 = vsyncpa [#allocation5], 0
    %s12 = scalar_lea.sflag [#allocation5], 1
    %13 = vsyncpa %s12, 0
    loop: start=0, step=1, limit=4
    $region2: #{tpu_custom_call.1} parent=1 // loop_pre_header
      _
    $region3: #{tpu_custom_call.1} parent=1 // loop_header
      %s15 = sphi 0, %s19
      %p16 = scmp.ge.s32.totalorder %s15, 4
      %s25 = sphi 0, %s27
      %s28 = sphi 0, %s25
      %s29 = sphi 0, %s28
      %s45 = sphi 0, %s29
      %s51 = sphi 0, %s53
      %s54 = sphi 0, %s51
      %s55 = sphi 0, %s54
      %s71 = sphi 0, %s55
      %s77 = sphi 0, %s79
      %s80 = sphi 0, %s77
      %s81 = sphi 0, %s80
      %s97 = sphi 0, %s81
    $region4: #{tpu_custom_call.1} parent=1 // loop_header_branch
      %18 = sbr.rel (%p16) target = $region8
    $region5: #{tpu_custom_call.1} parent=1 // loop_body
      %s20 = ssub.s32 %s15, 1
      %s21 = ssub.s32 %s15, 2
      %s22 = sadd.s32 %s15, 1
      %s23 = ssub.s32 %s15, %s22
      %p24 = scmp.eq.s32.totalorder %s23, 0
      %s26 = sadd.s32 %s25, 1
      %s27 = scalar_select %p24, %s25, %s26
      %p30 = pneg %p24
      %p31 = scmp.eq.s32.totalorder %s15, 1
      %p32 = por %p30, %p31
      %p33 = scmp.ne.s32.totalorder %s25, %s28
      %p34 = scmp.eq.s32.totalorder %s15, 0
      %p35 = por %p33, %p34
      %p36 = scmp.ne.s32.totalorder %s25, %s28
      %p37 = scmp.eq.s32.totalorder %s20, 1
      %p38 = por %p36, %p37
      %p39 = scmp.ne.s32.totalorder %s28, %s29
      %p40 = scmp.eq.s32.totalorder %s20, 0
      %p41 = por %p39, %p40
      %p42 = scmp.ne.s32.totalorder %s28, %s29
      %p43 = scmp.eq.s32.totalorder %s21, 1
      %p44 = por %p42, %p43
      %p46 = scmp.ne.s32.totalorder %s29, %s45
      %p47 = scmp.eq.s32.totalorder %s21, 0
      %p48 = por %p46, %p47
      %s49 = ssub.s32 %s15, %s22
      %p50 = scmp.eq.s32.totalorder %s49, 0
      %s52 = sadd.s32 %s51, 1
      %s53 = scalar_select %p50, %s51, %s52
      %p56 = pneg %p50
      %p57 = scmp.eq.s32.totalorder %s15, 1
      %p58 = por %p56, %p57
      %p59 = scmp.ne.s32.totalorder %s51, %s54
      %p60 = scmp.eq.s32.totalorder %s15, 0
      %p61 = por %p59, %p60
      %p62 = scmp.ne.s32.totalorder %s51, %s54
      %p63 = scmp.eq.s32.totalorder %s20, 1
      %p64 = por %p62, %p63
      %p65 = scmp.ne.s32.totalorder %s54, %s55
      %p66 = scmp.eq.s32.totalorder %s20, 0
      %p67 = por %p65, %p66
      %p68 = scmp.ne.s32.totalorder %s54, %s55
      %p69 = scmp.eq.s32.totalorder %s21, 1
      %p70 = por %p68, %p69
      %p72 = scmp.ne.s32.totalorder %s55, %s71
      %p73 = scmp.eq.s32.totalorder %s21, 0
      %p74 = por %p72, %p73
      %s75 = ssub.s32 %s15, %s22
      %p76 = scmp.eq.s32.totalorder %s75, 0
      %s78 = sadd.s32 %s77, 1
      %s79 = scalar_select %p76, %s77, %s78
      %p82 = pneg %p76
      %p83 = scmp.eq.s32.totalorder %s15, 1
      %p84 = por %p82, %p83
      %p85 = scmp.ne.s32.totalorder %s77, %s80
      %p86 = scmp.eq.s32.totalorder %s15, 0
      %p87 = por %p85, %p86
      %p88 = scmp.ne.s32.totalorder %s77, %s80
      %p89 = scmp.eq.s32.totalorder %s20, 1
      %p90 = por %p88, %p89
      %p91 = scmp.ne.s32.totalorder %s80, %s81
      %p92 = scmp.eq.s32.totalorder %s20, 0
      %p93 = por %p91, %p92
      %p94 = scmp.ne.s32.totalorder %s80, %s81
      %p95 = scmp.eq.s32.totalorder %s21, 1
      %p96 = por %p94, %p95
      %p98 = scmp.ne.s32.totalorder %s81, %s97
      %p99 = scmp.eq.s32.totalorder %s21, 0
      %p100 = por %p98, %p99
      %p101 = scmp.le.s32.totalorder 1, %s15
      %p102 = scmp.lt.s32.totalorder %s15, 3
      %p103 = pnand %p101, %p102
      %p104 = pneg %p103
      // Predicated region
      $region9: #{tpu_custom_call.1} parent=5 // pred_check
        _
      $region10: #{tpu_custom_call.1} parent=5 // pred_check_branch
        %106 = sbr.rel (%p103) target = $region12
      $region11: #{tpu_custom_call.1} parent=5 // pred_region
        %s107 = ssub.s32 %s15, 1
      $region12: #{tpu_custom_call.1} parent=5 // pred_fallthru
        _
      %p108 = scmp.lt.s32.totalorder %s15, 2
      // Predicated region
      $region13: #{tpu_custom_call.1} parent=5 // pred_check
        %p109 = pneg %p108
      $region14: #{tpu_custom_call.1} parent=5 // pred_check_branch
        %111 = sbr.rel (%p109) target = $region16
      $region15: #{tpu_custom_call.1} parent=5 // pred_region
        // Predicated region
        $region17: #{tpu_custom_call.1} parent=15 // pred_check
          %p112 = pneg %p35
        $region18: #{tpu_custom_call.1} parent=15 // pred_check_branch
          %114 = sbr.rel (%p112) target = $region20
        $region19: #{tpu_custom_call.1} parent=15 // pred_region
          %s115 = smul.u32 4, %s15
          %p116 = scmp.lt.s32.totalorder %s115, 7
          %s117 = scalar_select %p116, %s115, 7
          %s118 = smul.addr %s117, 2
          %s119 = smul.addr %s118, 4
          %s120 = scalar_lea.vmem %s0, %s119
          %s121 = smul.u32 4, %s15
        $region20: #{tpu_custom_call.1} parent=15 // pred_fallthru
          _
      $region16: #{tpu_custom_call.1} parent=5 // pred_fallthru
        _
      %p122 = scmp.le.s32.totalorder 1, %s15
      %p123 = scmp.lt.s32.totalorder %s15, 3
      %p124 = pnand %p122, %p123
      %p125 = pneg %p124
      // Predicated region
      $region21: #{tpu_custom_call.1} parent=5 // pred_check
        _
      $region22: #{tpu_custom_call.1} parent=5 // pred_check_branch
        %127 = sbr.rel (%p124) target = $region24
      $region23: #{tpu_custom_call.1} parent=5 // pred_region
        %s128 = ssub.s32 %s15, 1
        %s129 = smul.u32 4, %s20
        %p130 = scmp.lt.s32.totalorder %s129, 7
        %s131 = scalar_select %p130, %s129, 7
        %s132 = smul.addr %s131, 2
        %s133 = smul.addr %s132, 4
        %s134 = scalar_lea.vmem %s0, %s133
        %p135 = pneg %p41
        %p136 = pneg %p38
        %p137 = pneg %p67
        %p138 = pneg %p64
        %s139 = sand.u32 %s54, 1
        %s140 = scalar_lea.sflag [#allocation3], %s139
        %s141 = sand.u32 %s54, 1
        %s142 = smul.addr %s141, 16
        %s143 = scalar_lea.vmem [#allocation2], %s142
        %p144 = pneg %p93
        %p145 = pneg %p90
        %s146 = sand.u32 %s80, 1
        %s147 = scalar_lea.sflag [#allocation5], %s146
        %s148 = sand.u32 %s80, 1
        %s149 = smul.addr %s148, 16
        %s150 = scalar_lea.vmem [#allocation4], %s149
        %s151 = smul.u32 4, %s20
        %p152 = scmp.lt.s32.totalorder %s151, 7
        %s153 = scalar_select %p152, %s151, 7
        %s154 = smul.addr %s153, 2
        %s155 = smul.addr %s154, 4
        %s156 = scalar_lea.vmem %s0, %s155
        %s157 = smul.u32 4, %s20
        %s158 = smul.u32 4, %s20
        %s159 = smul.u32 4, %s20
        %v160 = vld [vmem:[%s156] sm:$0x77]
        %v161 = vld [vmem:[%s156 + $0x8] sm:$0x77]
        %v162 = vld [vmem:[%s156 + $0x10] sm:$0x77]
        %v163 = vld [vmem:[%s156 + $0x18] sm:$0x77]
        %v168 = vrot.slane %v160, 5
        %v169 = vrot.slane %v168, 4
        %v170 = vrot.slane %v161, 5
        %v171 = vrot.slane %v170, 4
        %v172 = vrot.slane %v162, 5
        %v173 = vrot.slane %v172, 4
        %v174 = vrot.slane %v163, 5
        %v175 = vrot.slane %v174, 4
        %v180 = vsub.f32 %v160, %v169
        %v181 = vsub.f32 %v161, %v171
        %v182 = vsub.f32 %v162, %v173
        %v183 = vsub.f32 %v163, %v175
        %v184 = vand.u32 2147483647, %v180
        %v185 = vand.u32 2147483647, %v181
        %v186 = vand.u32 2147483647, %v182
        %v187 = vand.u32 2147483647, %v183
        %v192 = vcombine.high %v184, %v184
        %v193 = vcombine.high %v185, %v185
        %v194 = vcombine.high %v186, %v186
        %v195 = vcombine.high %v187, %v187
        %200 = vrot.lane.b32.xlu0 %v184, 112
        %v201 = vpop.permute.xlu0 %200
        %202 = vrot.lane.b32.xlu0 %v185, 112
        %v203 = vpop.permute.xlu0 %202
        %204 = vrot.lane.b32.xlu0 %v186, 112
        %v205 = vpop.permute.xlu0 %204
        %206 = vrot.lane.b32.xlu0 %v187, 112
        %v207 = vpop.permute.xlu0 %206
        %208 = vrot.lane.b32.xlu0 %v192, 112
        %v209 = vpop.permute.xlu0 %208
        %210 = vrot.lane.b32.xlu0 %v193, 112
        %v211 = vpop.permute.xlu0 %210
        %212 = vrot.lane.b32.xlu0 %v194, 112
        %v213 = vpop.permute.xlu0 %212
        %214 = vrot.lane.b32.xlu0 %v195, 112
        %v215 = vpop.permute.xlu0 %214
        %v216 = vlaneseq
        %v217 = vand.u32 %v216, 127
        %vm218 = vcmp.lt.s32.totalorder %v217, 112
        %v219 = vsel %vm218, %v201, %v209
        %v220 = vsel %vm218, %v203, %v211
        %v221 = vsel %vm218, %v205, %v213
        %v222 = vsel %vm218, %v207, %v215
        %v223 = vsel %vm218, %v209, %v201
        %v224 = vsel %vm218, %v211, %v203
        %v225 = vsel %vm218, %v213, %v205
        %v226 = vsel %vm218, %v215, %v207
        %v235 = vcombine.low %v219, %v223
        %v236 = vcombine.low %v220, %v224
        %v237 = vcombine.low %v221, %v225
        %v238 = vcombine.low %v222, %v226
        %v243 = vsub.f32 %v184, %v235
        %v244 = vsub.f32 %v185, %v236
        %v245 = vsub.f32 %v186, %v237
        %v246 = vsub.f32 %v187, %v238
        %v247 = vand.u32 2147483647, %v243
        %v248 = vand.u32 2147483647, %v244
        %v249 = vand.u32 2147483647, %v245
        %v250 = vand.u32 2147483647, %v246
        %251 = vrot.lane.b32.xlu0 %v184, 127
        %v252 = vpop.permute.xlu0 %251
        %253 = vrot.lane.b32.xlu0 %v185, 127
        %v254 = vpop.permute.xlu0 %253
        %255 = vrot.lane.b32.xlu0 %v186, 127
        %v256 = vpop.permute.xlu0 %255
        %257 = vrot.lane.b32.xlu0 %v187, 127
        %v258 = vpop.permute.xlu0 %257
        %259 = vrot.lane.b32.xlu0 %v192, 127
        %v260 = vpop.permute.xlu0 %259
        %261 = vrot.lane.b32.xlu0 %v193, 127
        %v262 = vpop.permute.xlu0 %261
        %263 = vrot.lane.b32.xlu0 %v194, 127
        %v264 = vpop.permute.xlu0 %263
        %265 = vrot.lane.b32.xlu0 %v195, 127
        %v266 = vpop.permute.xlu0 %265
        %vm267 = vcmp.lt.s32.totalorder %v217, 127
        %v268 = vsel %vm267, %v252, %v260
        %v269 = vsel %vm267, %v254, %v262
        %v270 = vsel %vm267, %v256, %v264
        %v271 = vsel %vm267, %v258, %v266
        %v272 = vsel %vm267, %v260, %v252
        %v273 = vsel %vm267, %v262, %v254
        %v274 = vsel %vm267, %v264, %v256
        %v275 = vsel %vm267, %v266, %v258
        %v284 = vcombine.low %v268, %v272
        %v285 = vcombine.low %v269, %v273
        %v286 = vcombine.low %v270, %v274
        %v287 = vcombine.low %v271, %v275
        %v292 = vsub.f32 %v184, %v284
        %v293 = vsub.f32 %v185, %v285
        %v294 = vsub.f32 %v186, %v286
        %v295 = vsub.f32 %v187, %v287
        %v296 = vand.u32 2147483647, %v292
        %v297 = vand.u32 2147483647, %v293
        %v298 = vand.u32 2147483647, %v294
        %v299 = vand.u32 2147483647, %v295
        %v305 = vunpack.c.l.s4 1983009808
        %v306 = vunpack.c.0.s8 %v305
        %v307 = vlaneseq
        %v308 = vshrl.u32 %v307, 7
        %v309 = vsub.s32 %v306, %v308
        %v310 = vrot.slane %v247, %v309
        %v312 = vunpack.c.l.s4 1983009808
        %v313 = vunpack.c.0.s8 %v312
        %v314 = vlaneseq
        %v315 = vshrl.u32 %v314, 7
        %v316 = vsub.s32 %v313, %v315
        %v317 = vrot.slane %v248, %v316
        %v319 = vunpack.c.l.s4 1983009808
        %v320 = vunpack.c.0.s8 %v319
        %v321 = vlaneseq
        %v322 = vshrl.u32 %v321, 7
        %v323 = vsub.s32 %v320, %v322
        %v324 = vrot.slane %v249, %v323
        %v326 = vunpack.c.l.s4 1983009808
        %v327 = vunpack.c.0.s8 %v326
        %v328 = vlaneseq
        %v329 = vshrl.u32 %v328, 7
        %v330 = vsub.s32 %v327, %v329
        %v331 = vrot.slane %v250, %v330
        %vm336 = vcmask 1041408
        %vm337 = vcmask 912386
        %vm338 = vmor %vm337, %vm336
        %339 = vst.msk [vmem:[%s143] sm:$0xf] %vm338, %v310
        %340 = vst.msk [vmem:[%s143 + $0x4] sm:$0xf] %vm338, %v317
        %341 = vst.msk [vmem:[%s143 + $0x8] sm:$0xf] %vm338, %v324
        %342 = vst.msk [vmem:[%s143 + $0xc] sm:$0xf] %vm338, %v331
        %v348 = vunpack.c.l.s4 1983009808
        %v349 = vunpack.c.0.s8 %v348
        %v350 = vlaneseq
        %v351 = vshrl.u32 %v350, 7
        %v352 = vsub.s32 %v349, %v351
        %v353 = vrot.slane %v296, %v352
        %v355 = vunpack.c.l.s4 1983009808
        %v356 = vunpack.c.0.s8 %v355
        %v357 = vlaneseq
        %v358 = vshrl.u32 %v357, 7
        %v359 = vsub.s32 %v356, %v358
        %v360 = vrot.slane %v297, %v359
        %v362 = vunpack.c.l.s4 1983009808
        %v363 = vunpack.c.0.s8 %v362
        %v364 = vlaneseq
        %v365 = vshrl.u32 %v364, 7
        %v366 = vsub.s32 %v363, %v365
        %v367 = vrot.slane %v298, %v366
        %v369 = vunpack.c.l.s4 1983009808
        %v370 = vunpack.c.0.s8 %v369
        %v371 = vlaneseq
        %v372 = vshrl.u32 %v371, 7
        %v373 = vsub.s32 %v370, %v372
        %v374 = vrot.slane %v299, %v373
        %379 = vst [vmem:[%s150] sm:$0xf] %v353
        %380 = vst [vmem:[%s150 + $0x4] sm:$0xf] %v360
        %381 = vst [vmem:[%s150 + $0x8] sm:$0xf] %v367
        %382 = vst [vmem:[%s150 + $0xc] sm:$0xf] %v374
        %s383 = sand.u32 %s54, 1
        %s384 = scalar_lea.sflag [#allocation3], %s383
        %s385 = sand.u32 %s54, 1
        %s386 = smul.addr %s385, 16
        %s387 = scalar_lea.vmem [#allocation2], %s386
        %s388 = sand.u32 %s80, 1
        %s389 = scalar_lea.sflag [#allocation5], %s388
        %s390 = sand.u32 %s80, 1
        %s391 = smul.addr %s390, 16
        %s392 = scalar_lea.vmem [#allocation4], %s391
        // Predicated region
        $region25: #{tpu_custom_call.1} parent=23 // pred_check
          %p393 = pneg %p64
        $region26: #{tpu_custom_call.1} parent=23 // pred_check_branch
          %395 = sbr.rel (%p393) target = $region28
        $region27: #{tpu_custom_call.1} parent=23 // pred_region
          %s396 = smul.u32 4, %s20
          %s398 = ssub.s32 256, 256
          %399 = vsyncadd %s384, %s398
          %s400 = smul.addr %s396, 2
          %s401 = smul.addr %s400, 32
          %s402 = scalar_lea.hbm %s1, %s401
          %s403 = sshll.u32 %s387, 4
          %s404 = int_to_ptr.vmem [resolvable:$true] %s403
          %409 = dma.vmem_to_hbm [thread:$0]  %s404, 256, %s402, %s384, 64, 64, 4
        $region28: #{tpu_custom_call.1} parent=23 // pred_fallthru
          _
        // Predicated region
        $region29: #{tpu_custom_call.1} parent=23 // pred_check
          %p410 = pneg %p90
        $region30: #{tpu_custom_call.1} parent=23 // pred_check_branch
          %412 = sbr.rel (%p410) target = $region32
        $region31: #{tpu_custom_call.1} parent=23 // pred_region
          %s413 = smul.u32 4, %s20
          %s415 = ssub.s32 256, 256
          %416 = vsyncadd %s389, %s415
          %s417 = smul.addr %s413, 2
          %s418 = smul.addr %s417, 32
          %s419 = scalar_lea.hbm %s2, %s418
          %s420 = sshll.u32 %s392, 4
          %s421 = int_to_ptr.vmem [resolvable:$true] %s420
          %426 = dma.vmem_to_hbm [thread:$0]  %s421, 256, %s419, %s389, 64, 64, 4
        $region32: #{tpu_custom_call.1} parent=23 // pred_fallthru
          _
      $region24: #{tpu_custom_call.1} parent=5 // pred_fallthru
        _
      %p427 = scmp.le.s32.totalorder 2, %s15
      // Predicated region
      $region33: #{tpu_custom_call.1} parent=5 // pred_check
        %p428 = pneg %p427
      $region34: #{tpu_custom_call.1} parent=5 // pred_check_branch
        %430 = sbr.rel (%p428) target = $region36
      $region35: #{tpu_custom_call.1} parent=5 // pred_region
        %s431 = ssub.s32 %s15, 2
        // Predicated region
        $region37: #{tpu_custom_call.1} parent=35 // pred_check
          %p432 = pneg %p70
        $region38: #{tpu_custom_call.1} parent=35 // pred_check_branch
          %434 = sbr.rel (%p432) target = $region40
        $region39: #{tpu_custom_call.1} parent=35 // pred_region
          %s435 = sand.u32 %s55, 1
          %s436 = scalar_lea.sflag [#allocation3], %s435
          %s437 = sand.u32 %s55, 1
          %s438 = smul.addr %s437, 16
          %s439 = scalar_lea.vmem [#allocation2], %s438
          %440 = dma.done %s436, 256
        $region40: #{tpu_custom_call.1} parent=35 // pred_fallthru
          _
        // Predicated region
        $region41: #{tpu_custom_call.1} parent=35 // pred_check
          %p441 = pneg %p96
        $region42: #{tpu_custom_call.1} parent=35 // pred_check_branch
          %443 = sbr.rel (%p441) target = $region44
        $region43: #{tpu_custom_call.1} parent=35 // pred_region
          %s444 = sand.u32 %s81, 1
          %s445 = scalar_lea.sflag [#allocation5], %s444
          %s446 = sand.u32 %s81, 1
          %s447 = smul.addr %s446, 16
          %s448 = scalar_lea.vmem [#allocation4], %s447
          %449 = dma.done %s445, 256
        $region44: #{tpu_custom_call.1} parent=35 // pred_fallthru
          _
      $region36: #{tpu_custom_call.1} parent=5 // pred_fallthru
        _
    $region6: #{tpu_custom_call.1} parent=1 // loop_footer
      %s19 = sadd.s32 1, %s15
    $region7: #{tpu_custom_call.1} parent=1 // loop_footer_branch
      %14 = sbr.rel target = $region3
    $region8: #{tpu_custom_call.1} parent=1 // loop_exit
      _
    %450 = vsyncpa [#allocation3], 1
    %s451 = scalar_lea.sflag [#allocation3], 1
    %452 = vsyncpa %s451, 1
    %453 = vsyncpa [#allocation5], 1
    %s454 = scalar_lea.sflag [#allocation5], 1
    %455 = vsyncpa %s454, 1

</llo_original>
